<compile_context>
chip_gen: v7x
topology: tpu7x:2x2x1
jax: 0.10.0
libtpu: 0.0.40
codegen_flags: <defaults>
</compile_context>

<pallas_src>
import numpy as np
import jax
import jax.numpy as jnp
from jax.experimental import pallas as pl
from jax.experimental.pallas import tpu as pltpu


# ----------------------------------------------------------------------------
# Pallas kernel: fused (upsample o pad o conv3d) as one im2col matmul per batch.
# ----------------------------------------------------------------------------
def _upconv_pallas(xflat, w_all, b_all, *, Hp, Wp, Sout):
    """xflat: (N, Cin, Dp*Hp*Wp) padded small input, flattened spatial.
       w_all: (R, 27*Cin) phase-folded weights, R = phases*Cout.
       b_all: (R, 1) bias per output row.
       Returns (N, R, Sout) with Sout = D*Hp*Wp (interior columns are the result)."""
    N, Cin, Lp = xflat.shape
    R, Q = w_all.shape                               # Q == 27 * Cin

    def kernel(x_ref, w_ref, b_ref, o_ref, xcol_ref):
        xr = x_ref[0]                                # (Cin, Lp)
        # Fused upsample+pad+im2col: tap (od, oh, ow) of the 3x3x3 window is a
        # contiguous window of the flattened padded small input.
        t = 0
        for od in range(3):
            for oh in range(3):
                for ow in range(3):
                    off = od * Hp * Wp + oh * Wp + ow
                    xcol_ref[t * Cin:(t + 1) * Cin, :] = xr[:, off:off + Sout]
                    t += 1
        # Single deep matmul: (R, 108) @ (108, Sout) -> lane-dense (R, Sout).
        acc = jnp.dot(w_ref[...], xcol_ref[...],
                      preferred_element_type=jnp.float32)
        acc = acc + b_ref[...]                       # (R, 1) broadcast over lanes
        o_ref[0] = acc.astype(o_ref.dtype)

    return pl.pallas_call(
        kernel,
        out_shape=jax.ShapeDtypeStruct((N, R, Sout), xflat.dtype),
        grid_spec=pltpu.PrefetchScalarGridSpec(
            num_scalar_prefetch=0,
            grid=(N,),
            in_specs=[
                pl.BlockSpec((1, Cin, Lp), lambda n: (n, 0, 0)),
                pl.BlockSpec((R, Q), lambda n: (0, 0)),
                pl.BlockSpec((R, 1), lambda n: (0, 0)),
            ],
            out_specs=pl.BlockSpec((1, R, Sout), lambda n: (n, 0, 0)),
            scratch_shapes=[pltpu.VMEM((Q, Sout), jnp.float32)],
        ),
        compiler_params=pltpu.CompilerParams(
            dimension_semantics=("parallel",),
        ),
    )(xflat, w_all, b_all)


# ----------------------------------------------------------------------------
# Upsample.forward equivalent.
# ----------------------------------------------------------------------------
def upsample_forward(x, weight, bias, *, channels, stride=(2, 2, 2),
                     use_conv=True, dims=3):
    """x: (N, C, D, H, W) float32 (NCDHW, PyTorch convention)."""
    assert x.shape[1] == channels

    if dims != 3:
        # F.interpolate(scale_factor=2, mode='nearest') over all spatial dims.
        for ax in range(2, x.ndim):
            x = jnp.repeat(x, 2, axis=ax)
        if use_conv:
            # TODO(synk): fused conv path only implemented for dims == 3.
            raise NotImplementedError("use_conv with dims != 3 not implemented")
        return x

    s0, s1, s2 = stride
    if not use_conv:
        x = jnp.repeat(x, s0, axis=2)
        x = jnp.repeat(x, s1, axis=3)
        x = jnp.repeat(x, s2, axis=4)
        return x

    N, Cin, D, H, W = x.shape
    Cout = weight.shape[0]
    assert weight.shape[2:] == (3, 3, 3), "kernel=3 / padding=1 path only"

    # --- fold the nearest-upsample into the conv weights (per-dim phases) ----
    # For upsample stride s: output index = s*di + p; conv tap k (k=3, pad=1)
    # reads padded-small-input offset o = 1 + (p + k - 1)//s  in {0,1,2}.
    def phase_matrix(s):
        m = np.zeros((s, 3, 3), np.float32)
        for p in range(s):
            for k in range(3):
                m[p, 1 + (p + k - 1) // s, k] = 1.0
        return jnp.asarray(m)

    M0, M1, M2 = phase_matrix(s0), phase_matrix(s1), phase_matrix(s2)
    # W_eff[pd,ph,pw, co, od,oh,ow, ci]
    w_eff = jnp.einsum('adk,bel,cfm,oiklm->abcodefi', M0, M1, M2, weight,
                       precision=jax.lax.Precision.HIGHEST)
    P = s0 * s1 * s2
    w_all = w_eff.reshape(P * Cout, 27 * Cin)
    b_all = jnp.tile(bias, P).reshape(P * Cout, 1)

    # --- pad the SMALL input (cheap) and flatten spatial (free reshape) ------
    Dp, Hp, Wp = D + 3, H + 2, W + 2          # 1 extra trailing D plane of zeros
    xpad = jnp.pad(x, ((0, 0), (0, 0), (1, 2), (1, 1), (1, 1)))
    xflat = xpad.reshape(N, Cin, Dp * Hp * Wp)

    Sout = D * Hp * Wp                         # kernel computes these columns
    out_flat = _upconv_pallas(xflat, w_all, b_all, Hp=Hp, Wp=Wp, Sout=Sout)

    # --- output layout plumbing: drop pad columns, interleave phases ---------
    out = out_flat.reshape(N, P * Cout, D, Hp, Wp)[:, :, :, :H, :W]
    out = out.reshape(N, s0, s1, s2, Cout, D, H, W)
    out = jnp.transpose(out, (0, 4, 5, 1, 6, 2, 7, 3))   # (N,Cout,D,s0,H,s1,W,s2)
    return out.reshape(N, Cout, D * s0, H * s1, W * s2)


# ----------------------------------------------------------------------------
# Demo / self-check
# ----------------------------------------------------------------------------
if __name__ == "__main__":
    # Module config: channels=4, use_conv=True, out_channels=4, dims=3,
    # padding=1, stride=(2,2,2), kernel=3.
    N, C, D, H, W = 2, 4, 4, 4, 4
    Cout, K = 4, 3
    stride = (2, 2, 2)

    key = jax.random.PRNGKey(0)
    kx, kw, kb = jax.random.split(key, 3)
    x = jax.random.normal(kx, (N, C, D, H, W), dtype=jnp.float32)
    # PyTorch Conv3d weight layout is (Cout, Cin, kd, kh, kw).
    weight = jax.random.normal(kw, (Cout, C, K, K, K), dtype=jnp.float32) * 0.1
    bias = jax.random.normal(kb, (Cout,), dtype=jnp.float32) * 0.1

    out = upsample_forward(x, weight, bias, channels=C, stride=stride,
                           use_conv=True, dims=3)
    out = jax.block_until_ready(out)

    # Reference: nearest upsample + XLA conv, NCDHW.
    x_up = jnp.repeat(jnp.repeat(jnp.repeat(x, stride[0], axis=2),
                                 stride[1], axis=3), stride[2], axis=4)
    ref = jax.lax.conv_general_dilated(
        x_up, weight, window_strides=(1, 1, 1),
        padding=((1, 1), (1, 1), (1, 1)),
        dimension_numbers=("NCDHW", "OIDHW", "NCDHW"),
        precision=jax.lax.Precision.HIGHEST,
    ) + bias.reshape(1, -1, 1, 1, 1)

    assert out.shape == (N, Cout, D * stride[0], H * stride[1], W * stride[2])
    assert jnp.allclose(out, ref, atol=1e-3, rtol=1e-3), "mismatch vs reference conv"
    print("KERNEL_OK")
</pallas_src>

<mosaic_0001>
module attributes {stable_mosaic.version = 11 : i64} {
  func.func @kernel(%arg0: i32, %arg1: memref<1x4x252xf32, #tpu.memory_space<vmem>>, %arg2: memref<32x108xf32, #tpu.memory_space<vmem>>, %arg3: memref<32x1xf32, #tpu.memory_space<vmem>>, %arg4: memref<1x32x144xf32, #tpu.memory_space<vmem>>, %arg5: memref<108x144xf32, #tpu.memory_space<vmem>>) attributes {dimension_semantics = [#tpu.dimension_semantics<parallel>], iteration_bounds = array<i64: 2>, scalar_prefetch = 0 : i64, scratch_operands = 1 : i64, tpu.core_type = #tpu.core_type<tc>, window_params = [{transform_indices = @transform_0, window_bounds = array<i64: 1, 4, 252>}, {pipeline_mode = #tpu.pipeline_mode<synchronous>, transform_indices = @transform_1, window_bounds = array<i64: 32, 108>}, {pipeline_mode = #tpu.pipeline_mode<synchronous>, transform_indices = @transform_2, window_bounds = array<i64: 32, 1>}, {transform_indices = @transform_3, window_bounds = array<i64: 1, 32, 144>}]} {
    %c0 = arith.constant 0 : index
    %c0_0 = arith.constant 0 : index
    %c0_1 = arith.constant 0 : index
    %0 = vector.load %arg1[%c0, %c0_0, %c0_1] : memref<1x4x252xf32, #tpu.memory_space<vmem>>, vector<1x4x252xf32>
    %1 = vector.shape_cast %0 : vector<1x4x252xf32> to vector<4x252xf32>
    %2 = vector.extract_strided_slice %1 {offsets = [0, 0], sizes = [4, 144], strides = [1, 1]} : vector<4x252xf32> to vector<4x144xf32>
    %c0_2 = arith.constant 0 : index
    %c0_3 = arith.constant 0 : index
    %3 = vector.load %arg5[%c0_2, %c0_3] : memref<108x144xf32, #tpu.memory_space<vmem>>, vector<4x144xf32>
    tpu.vector_store %arg5[%c0_2, %c0_3], %2 {strides = array<i32>} : memref<108x144xf32, #tpu.memory_space<vmem>>, vector<4x144xf32>,
    %4 = vector.extract_strided_slice %1 {offsets = [0, 1], sizes = [4, 144], strides = [1, 1]} : vector<4x252xf32> to vector<4x144xf32>
    %c4 = arith.constant 4 : index
    %c0_4 = arith.constant 0 : index
    %5 = vector.load %arg5[%c4, %c0_4] : memref<108x144xf32, #tpu.memory_space<vmem>>, vector<4x144xf32>
    tpu.vector_store %arg5[%c4, %c0_4], %4 {strides = array<i32>} : memref<108x144xf32, #tpu.memory_space<vmem>>, vector<4x144xf32>,
    %6 = vector.extract_strided_slice %1 {offsets = [0, 2], sizes = [4, 144], strides = [1, 1]} : vector<4x252xf32> to vector<4x144xf32>
    %c8 = arith.constant 8 : index
    %c0_5 = arith.constant 0 : index
    %7 = vector.load %arg5[%c8, %c0_5] : memref<108x144xf32, #tpu.memory_space<vmem>>, vector<4x144xf32>
    tpu.vector_store %arg5[%c8, %c0_5], %6 {strides = array<i32>} : memref<108x144xf32, #tpu.memory_space<vmem>>, vector<4x144xf32>,
    %8 = vector.extract_strided_slice %1 {offsets = [0, 6], sizes = [4, 144], strides = [1, 1]} : vector<4x252xf32> to vector<4x144xf32>
    %c12 = arith.constant 12 : index
    %c0_6 = arith.constant 0 : index
    %9 = vector.load %arg5[%c12, %c0_6] : memref<108x144xf32, #tpu.memory_space<vmem>>, vector<4x144xf32>
    tpu.vector_store %arg5[%c12, %c0_6], %8 {strides = array<i32>} : memref<108x144xf32, #tpu.memory_space<vmem>>, vector<4x144xf32>,
    %10 = vector.extract_strided_slice %1 {offsets = [0, 7], sizes = [4, 144], strides = [1, 1]} : vector<4x252xf32> to vector<4x144xf32>
    %c16 = arith.constant 16 : index
    %c0_7 = arith.constant 0 : index
    %11 = vector.load %arg5[%c16, %c0_7] : memref<108x144xf32, #tpu.memory_space<vmem>>, vector<4x144xf32>
    tpu.vector_store %arg5[%c16, %c0_7], %10 {strides = array<i32>} : memref<108x144xf32, #tpu.memory_space<vmem>>, vector<4x144xf32>,
    %12 = vector.extract_strided_slice %1 {offsets = [0, 8], sizes = [4, 144], strides = [1, 1]} : vector<4x252xf32> to vector<4x144xf32>
    %c20 = arith.constant 20 : index
    %c0_8 = arith.constant 0 : index
    %13 = vector.load %arg5[%c20, %c0_8] : memref<108x144xf32, #tpu.memory_space<vmem>>, vector<4x144xf32>
    tpu.vector_store %arg5[%c20, %c0_8], %12 {strides = array<i32>} : memref<108x144xf32, #tpu.memory_space<vmem>>, vector<4x144xf32>,
    %14 = vector.extract_strided_slice %1 {offsets = [0, 12], sizes = [4, 144], strides = [1, 1]} : vector<4x252xf32> to vector<4x144xf32>
    %c24 = arith.constant 24 : index
    %c0_9 = arith.constant 0 : index
    %15 = vector.load %arg5[%c24, %c0_9] : memref<108x144xf32, #tpu.memory_space<vmem>>, vector<4x144xf32>
    tpu.vector_store %arg5[%c24, %c0_9], %14 {strides = array<i32>} : memref<108x144xf32, #tpu.memory_space<vmem>>, vector<4x144xf32>,
    %16 = vector.extract_strided_slice %1 {offsets = [0, 13], sizes = [4, 144], strides = [1, 1]} : vector<4x252xf32> to vector<4x144xf32>
    %c28 = arith.constant 28 : index
    %c0_10 = arith.constant 0 : index
    %17 = vector.load %arg5[%c28, %c0_10] : memref<108x144xf32, #tpu.memory_space<vmem>>, vector<4x144xf32>
    tpu.vector_store %arg5[%c28, %c0_10], %16 {strides = array<i32>} : memref<108x144xf32, #tpu.memory_space<vmem>>, vector<4x144xf32>,
    %18 = vector.extract_strided_slice %1 {offsets = [0, 14], sizes = [4, 144], strides = [1, 1]} : vector<4x252xf32> to vector<4x144xf32>
    %c32 = arith.constant 32 : index
    %c0_11 = arith.constant 0 : index
    %19 = vector.load %arg5[%c32, %c0_11] : memref<108x144xf32, #tpu.memory_space<vmem>>, vector<4x144xf32>
    tpu.vector_store %arg5[%c32, %c0_11], %18 {strides = array<i32>} : memref<108x144xf32, #tpu.memory_space<vmem>>, vector<4x144xf32>,
    %20 = vector.extract_strided_slice %1 {offsets = [0, 36], sizes = [4, 144], strides = [1, 1]} : vector<4x252xf32> to vector<4x144xf32>
    %c36 = arith.constant 36 : index
    %c0_12 = arith.constant 0 : index
    %21 = vector.load %arg5[%c36, %c0_12] : memref<108x144xf32, #tpu.memory_space<vmem>>, vector<4x144xf32>
    tpu.vector_store %arg5[%c36, %c0_12], %20 {strides = array<i32>} : memref<108x144xf32, #tpu.memory_space<vmem>>, vector<4x144xf32>,
    %22 = vector.extract_strided_slice %1 {offsets = [0, 37], sizes = [4, 144], strides = [1, 1]} : vector<4x252xf32> to vector<4x144xf32>
    %c40 = arith.constant 40 : index
    %c0_13 = arith.constant 0 : index
    %23 = vector.load %arg5[%c40, %c0_13] : memref<108x144xf32, #tpu.memory_space<vmem>>, vector<4x144xf32>
    tpu.vector_store %arg5[%c40, %c0_13], %22 {strides = array<i32>} : memref<108x144xf32, #tpu.memory_space<vmem>>, vector<4x144xf32>,
    %24 = vector.extract_strided_slice %1 {offsets = [0, 38], sizes = [4, 144], strides = [1, 1]} : vector<4x252xf32> to vector<4x144xf32>
    %c44 = arith.constant 44 : index
    %c0_14 = arith.constant 0 : index
    %25 = vector.load %arg5[%c44, %c0_14] : memref<108x144xf32, #tpu.memory_space<vmem>>, vector<4x144xf32>
    tpu.vector_store %arg5[%c44, %c0_14], %24 {strides = array<i32>} : memref<108x144xf32, #tpu.memory_space<vmem>>, vector<4x144xf32>,
    %26 = vector.extract_strided_slice %1 {offsets = [0, 42], sizes = [4, 144], strides = [1, 1]} : vector<4x252xf32> to vector<4x144xf32>
    %c48 = arith.constant 48 : index
    %c0_15 = arith.constant 0 : index
    %27 = vector.load %arg5[%c48, %c0_15] : memref<108x144xf32, #tpu.memory_space<vmem>>, vector<4x144xf32>
    tpu.vector_store %arg5[%c48, %c0_15], %26 {strides = array<i32>} : memref<108x144xf32, #tpu.memory_space<vmem>>, vector<4x144xf32>,
    %28 = vector.extract_strided_slice %1 {offsets = [0, 43], sizes = [4, 144], strides = [1, 1]} : vector<4x252xf32> to vector<4x144xf32>
    %c52 = arith.constant 52 : index
    %c0_16 = arith.constant 0 : index
    %29 = vector.load %arg5[%c52, %c0_16] : memref<108x144xf32, #tpu.memory_space<vmem>>, vector<4x144xf32>
    tpu.vector_store %arg5[%c52, %c0_16], %28 {strides = array<i32>} : memref<108x144xf32, #tpu.memory_space<vmem>>, vector<4x144xf32>,
    %30 = vector.extract_strided_slice %1 {offsets = [0, 44], sizes = [4, 144], strides = [1, 1]} : vector<4x252xf32> to vector<4x144xf32>
    %c56 = arith.constant 56 : index
    %c0_17 = arith.constant 0 : index
    %31 = vector.load %arg5[%c56, %c0_17] : memref<108x144xf32, #tpu.memory_space<vmem>>, vector<4x144xf32>
    tpu.vector_store %arg5[%c56, %c0_17], %30 {strides = array<i32>} : memref<108x144xf32, #tpu.memory_space<vmem>>, vector<4x144xf32>,
    %32 = vector.extract_strided_slice %1 {offsets = [0, 48], sizes = [4, 144], strides = [1, 1]} : vector<4x252xf32> to vector<4x144xf32>
    %c60 = arith.constant 60 : index
    %c0_18 = arith.constant 0 : index
    %33 = vector.load %arg5[%c60, %c0_18] : memref<108x144xf32, #tpu.memory_space<vmem>>, vector<4x144xf32>
    tpu.vector_store %arg5[%c60, %c0_18], %32 {strides = array<i32>} : memref<108x144xf32, #tpu.memory_space<vmem>>, vector<4x144xf32>,
    %34 = vector.extract_strided_slice %1 {offsets = [0, 49], sizes = [4, 144], strides = [1, 1]} : vector<4x252xf32> to vector<4x144xf32>
    %c64 = arith.constant 64 : index
    %c0_19 = arith.constant 0 : index
    %35 = vector.load %arg5[%c64, %c0_19] : memref<108x144xf32, #tpu.memory_space<vmem>>, vector<4x144xf32>
    tpu.vector_store %arg5[%c64, %c0_19], %34 {strides = array<i32>} : memref<108x144xf32, #tpu.memory_space<vmem>>, vector<4x144xf32>,
    %36 = vector.extract_strided_slice %1 {offsets = [0, 50], sizes = [4, 144], strides = [1, 1]} : vector<4x252xf32> to vector<4x144xf32>
    %c68 = arith.constant 68 : index
    %c0_20 = arith.constant 0 : index
    %37 = vector.load %arg5[%c68, %c0_20] : memref<108x144xf32, #tpu.memory_space<vmem>>, vector<4x144xf32>
    tpu.vector_store %arg5[%c68, %c0_20], %36 {strides = array<i32>} : memref<108x144xf32, #tpu.memory_space<vmem>>, vector<4x144xf32>,
    %38 = vector.extract_strided_slice %1 {offsets = [0, 72], sizes = [4, 144], strides = [1, 1]} : vector<4x252xf32> to vector<4x144xf32>
    %c72 = arith.constant 72 : index
    %c0_21 = arith.constant 0 : index
    %39 = vector.load %arg5[%c72, %c0_21] : memref<108x144xf32, #tpu.memory_space<vmem>>, vector<4x144xf32>
    tpu.vector_store %arg5[%c72, %c0_21], %38 {strides = array<i32>} : memref<108x144xf32, #tpu.memory_space<vmem>>, vector<4x144xf32>,
    %40 = vector.extract_strided_slice %1 {offsets = [0, 73], sizes = [4, 144], strides = [1, 1]} : vector<4x252xf32> to vector<4x144xf32>
    %c76 = arith.constant 76 : index
    %c0_22 = arith.constant 0 : index
    %41 = vector.load %arg5[%c76, %c0_22] : memref<108x144xf32, #tpu.memory_space<vmem>>, vector<4x144xf32>
    tpu.vector_store %arg5[%c76, %c0_22], %40 {strides = array<i32>} : memref<108x144xf32, #tpu.memory_space<vmem>>, vector<4x144xf32>,
    %42 = vector.extract_strided_slice %1 {offsets = [0, 74], sizes = [4, 144], strides = [1, 1]} : vector<4x252xf32> to vector<4x144xf32>
    %c80 = arith.constant 80 : index
    %c0_23 = arith.constant 0 : index
    %43 = vector.load %arg5[%c80, %c0_23] : memref<108x144xf32, #tpu.memory_space<vmem>>, vector<4x144xf32>
    tpu.vector_store %arg5[%c80, %c0_23], %42 {strides = array<i32>} : memref<108x144xf32, #tpu.memory_space<vmem>>, vector<4x144xf32>,
    %44 = vector.extract_strided_slice %1 {offsets = [0, 78], sizes = [4, 144], strides = [1, 1]} : vector<4x252xf32> to vector<4x144xf32>
    %c84 = arith.constant 84 : index
    %c0_24 = arith.constant 0 : index
    %45 = vector.load %arg5[%c84, %c0_24] : memref<108x144xf32, #tpu.memory_space<vmem>>, vector<4x144xf32>
    tpu.vector_store %arg5[%c84, %c0_24], %44 {strides = array<i32>} : memref<108x144xf32, #tpu.memory_space<vmem>>, vector<4x144xf32>,
    %46 = vector.extract_strided_slice %1 {offsets = [0, 79], sizes = [4, 144], strides = [1, 1]} : vector<4x252xf32> to vector<4x144xf32>
    %c88 = arith.constant 88 : index
    %c0_25 = arith.constant 0 : index
    %47 = vector.load %arg5[%c88, %c0_25] : memref<108x144xf32, #tpu.memory_space<vmem>>, vector<4x144xf32>
    tpu.vector_store %arg5[%c88, %c0_25], %46 {strides = array<i32>} : memref<108x144xf32, #tpu.memory_space<vmem>>, vector<4x144xf32>,
    %48 = vector.extract_strided_slice %1 {offsets = [0, 80], sizes = [4, 144], strides = [1, 1]} : vector<4x252xf32> to vector<4x144xf32>
    %c92 = arith.constant 92 : index
    %c0_26 = arith.constant 0 : index
    %49 = vector.load %arg5[%c92, %c0_26] : memref<108x144xf32, #tpu.memory_space<vmem>>, vector<4x144xf32>
    tpu.vector_store %arg5[%c92, %c0_26], %48 {strides = array<i32>} : memref<108x144xf32, #tpu.memory_space<vmem>>, vector<4x144xf32>,
    %50 = vector.extract_strided_slice %1 {offsets = [0, 84], sizes = [4, 144], strides = [1, 1]} : vector<4x252xf32> to vector<4x144xf32>
    %c96 = arith.constant 96 : index
    %c0_27 = arith.constant 0 : index
    %51 = vector.load %arg5[%c96, %c0_27] : memref<108x144xf32, #tpu.memory_space<vmem>>, vector<4x144xf32>
    tpu.vector_store %arg5[%c96, %c0_27], %50 {strides = array<i32>} : memref<108x144xf32, #tpu.memory_space<vmem>>, vector<4x144xf32>,
    %52 = vector.extract_strided_slice %1 {offsets = [0, 85], sizes = [4, 144], strides = [1, 1]} : vector<4x252xf32> to vector<4x144xf32>
    %c100 = arith.constant 100 : index
    %c0_28 = arith.constant 0 : index
    %53 = vector.load %arg5[%c100, %c0_28] : memref<108x144xf32, #tpu.memory_space<vmem>>, vector<4x144xf32>
    tpu.vector_store %arg5[%c100, %c0_28], %52 {strides = array<i32>} : memref<108x144xf32, #tpu.memory_space<vmem>>, vector<4x144xf32>,
    %54 = vector.extract_strided_slice %1 {offsets = [0, 86], sizes = [4, 144], strides = [1, 1]} : vector<4x252xf32> to vector<4x144xf32>
    %c104 = arith.constant 104 : index
    %c0_29 = arith.constant 0 : index
    %55 = vector.load %arg5[%c104, %c0_29] : memref<108x144xf32, #tpu.memory_space<vmem>>, vector<4x144xf32>
    tpu.vector_store %arg5[%c104, %c0_29], %54 {strides = array<i32>} : memref<108x144xf32, #tpu.memory_space<vmem>>, vector<4x144xf32>,
    %c0_30 = arith.constant 0 : index
    %c0_31 = arith.constant 0 : index
    %56 = vector.load %arg2[%c0_30, %c0_31] : memref<32x108xf32, #tpu.memory_space<vmem>>, vector<32x108xf32>
    %c0_32 = arith.constant 0 : index
    %c0_33 = arith.constant 0 : index
    %57 = vector.load %arg5[%c0_32, %c0_33] : memref<108x144xf32, #tpu.memory_space<vmem>>, vector<108x144xf32>
    %cst = arith.constant dense<0.000000e+00> : vector<32x144xf32>
    %58 = tpu.matmul %56, %57, %cst {dimension_numbers = #tpu.dot_dimension_numbers<[1], [0], [0], [1], [0, 0, 1, 1], [], []>} : vector<32x108xf32>, vector<108x144xf32>, vector<32x144xf32> -> vector<32x144xf32>
    %c0_34 = arith.constant 0 : index
    %c0_35 = arith.constant 0 : index
    %59 = vector.load %arg3[%c0_34, %c0_35] : memref<32x1xf32, #tpu.memory_space<vmem>>, vector<32x1xf32>
    %60 = vector.broadcast %59 : vector<32x1xf32> to vector<32x144xf32>
    %61 = arith.addf %58, %60 : vector<32x144xf32>
    %c0_36 = arith.constant 0 : index
    %c0_37 = arith.constant 0 : index
    %c0_38 = arith.constant 0 : index
    %62 = vector.load %arg4[%c0_36, %c0_37, %c0_38] : memref<1x32x144xf32, #tpu.memory_space<vmem>>, vector<1x32x144xf32>
    %63 = vector.shape_cast %62 : vector<1x32x144xf32> to vector<32x144xf32>
    %64 = vector.shape_cast %61 : vector<32x144xf32> to vector<1x32x144xf32>
    tpu.vector_store %arg4[%c0_36, %c0_37, %c0_38], %64 {strides = array<i32>} : memref<1x32x144xf32, #tpu.memory_space<vmem>>, vector<1x32x144xf32>,
    return
  }
  func.func @transform_0(%arg0: i32) -> (i32, i32, i32) {
    %c0_i32 = arith.constant 0 : i32
    %c0_i32_0 = arith.constant 0 : i32
    %c0_i32_1 = arith.constant 0 : i32
    return %arg0, %c0_i32, %c0_i32_0 : i32, i32, i32
  }
  func.func @transform_1(%arg0: i32) -> (i32, i32) {
    %c0_i32 = arith.constant 0 : i32
    %c0_i32_0 = arith.constant 0 : i32
    %c0_i32_1 = arith.constant 0 : i32
    return %c0_i32, %c0_i32_0 : i32, i32
  }
  func.func @transform_2(%arg0: i32) -> (i32, i32) {
    %c0_i32 = arith.constant 0 : i32
    %c0_i32_0 = arith.constant 0 : i32
    %c0_i32_1 = arith.constant 0 : i32
    return %c0_i32, %c0_i32_0 : i32, i32
  }
  func.func @transform_3(%arg0: i32) -> (i32, i32, i32) {
    %c0_i32 = arith.constant 0 : i32
    %c0_i32_0 = arith.constant 0 : i32
    %c0_i32_1 = arith.constant 0 : i32
    return %arg0, %c0_i32, %c0_i32_0 : i32, i32, i32
  }
}

</mosaic_0001>

<llo_original>
// kernel: tpu_custom_call.1
$region0: #{tpu_custom_call.1}
  #allocation0 [shape = 'u32[]', space=smem, size = 0x4, offset = 0x4, fixed_abs, tag = 'smem constant byte address 0x4 - core index']
  #allocation1 [shape = 'u32[144,128]{1,0:T(1,128)}', space=vmem, size = 0x12000, scoped, tag = 'internal scratch']
  #allocation2 [shape = 'f32[108,144]{1,0:T(8,128)}', space=vmem, size = 0x1c000, scoped, tag = 'scratch operand']
  %s0 = inlined_call_operand.hbm [shape: f32[2,4,252], index: 0, kind: input, shape index: {}]
  %s1 = inlined_call_operand.vmem [shape: f32[32,108], index: 1, kind: input, shape index: {}]
  %s2 = inlined_call_operand.vmem [shape: f32[32,1], index: 2, kind: input, shape index: {}]
  %s3 = inlined_call_operand.hbm [shape: f32[2,32,144], index: 3, kind: output, shape index: {}]
  %s4 = sld [smem:[#allocation0]]
  $region49: #{tpu_custom_call.1} parent=0
    _
  %s6 = ssub.s32 1, %s4
  %s7 = scalar_select 0, %s6, %s4
  $region1: #{tpu_custom_call.1} parent=0
    #allocation3 [shape = 'u8[8192]{0}', space=vmem, size = 0x2000, scoped, tag = 'input window, operand 0']
    #allocation4 [shape = 's32[2]{0}', space=sflag, size = 0x8, scoped, tag = 'scoped memory for tpu_custom_call.1']
    #allocation5 [shape = 's32[2]{0}', space=sflag, size = 0x8, scoped, tag = 'scoped memory for tpu_custom_call.1']
    #allocation6 [shape = 'u8[65536]{0}', space=vmem, size = 0x10000, scoped, tag = 'output window, operand 0']
    %8 = vsyncpa [#allocation4], 0
    %s9 = scalar_lea.sflag [#allocation4], 1
    %10 = vsyncpa %s9, 0
    %11 = vsyncpa [#allocation5], 0
    %s12 = scalar_lea.sflag [#allocation5], 1
    %13 = vsyncpa %s12, 0
    loop: start=0, step=1, limit=4
    $region2: #{tpu_custom_call.1} parent=1 // loop_pre_header
      _
    $region3: #{tpu_custom_call.1} parent=1 // loop_header
      %s15 = sphi 0, %s19
      %p16 = scmp.ge.s32.totalorder %s15, 4
      %s25 = sphi 0, %s27
      %s28 = sphi 0, %s25
      %s29 = sphi 0, %s28
      %s45 = sphi 0, %s29
      %s49 = sphi 0, %s49
      %s51 = sphi 0, %s49
      %s52 = sphi 0, %s51
      %s66 = sphi 0, %s52
      %s70 = sphi 0, %s70
      %s72 = sphi 0, %s70
      %s73 = sphi 0, %s72
      %s87 = sphi 0, %s73
      %s93 = sphi 0, %s95
      %s96 = sphi 0, %s93
      %s97 = sphi 0, %s96
      %s113 = sphi 0, %s97
    $region4: #{tpu_custom_call.1} parent=1 // loop_header_branch
      %18 = sbr.rel (%p16) target = $region8
    $region5: #{tpu_custom_call.1} parent=1 // loop_body
      %s20 = ssub.s32 %s15, 1
      %s21 = ssub.s32 %s15, 2
      %s22 = sadd.s32 %s15, 1
      %s23 = ssub.s32 %s15, %s22
      %p24 = scmp.eq.s32.totalorder %s23, 0
      %s26 = sadd.s32 %s25, 1
      %s27 = scalar_select %p24, %s25, %s26
      %p30 = pneg %p24
      %p31 = scmp.eq.s32.totalorder %s15, 1
      %p32 = por %p30, %p31
      %p33 = scmp.ne.s32.totalorder %s25, %s28
      %p34 = scmp.eq.s32.totalorder %s15, 0
      %p35 = por %p33, %p34
      %p36 = scmp.ne.s32.totalorder %s25, %s28
      %p37 = scmp.eq.s32.totalorder %s20, 1
      %p38 = por %p36, %p37
      %p39 = scmp.ne.s32.totalorder %s28, %s29
      %p40 = scmp.eq.s32.totalorder %s20, 0
      %p41 = por %p39, %p40
      %p42 = scmp.ne.s32.totalorder %s28, %s29
      %p43 = scmp.eq.s32.totalorder %s21, 1
      %p44 = por %p42, %p43
      %p46 = scmp.ne.s32.totalorder %s29, %s45
      %p47 = scmp.eq.s32.totalorder %s21, 0
      %p48 = por %p46, %p47
      %s50 = sadd.s32 %s49, 1
      %p53 = scmp.eq.s32.totalorder %s15, 1
      %p54 = scmp.ne.s32.totalorder %s49, %s51
      %p55 = scmp.eq.s32.totalorder %s15, 0
      %p56 = por %p54, %p55
      %p57 = scmp.ne.s32.totalorder %s49, %s51
      %p58 = scmp.eq.s32.totalorder %s20, 1
      %p59 = por %p57, %p58
      %p60 = scmp.ne.s32.totalorder %s51, %s52
      %p61 = scmp.eq.s32.totalorder %s20, 0
      %p62 = por %p60, %p61
      %p63 = scmp.ne.s32.totalorder %s51, %s52
      %p64 = scmp.eq.s32.totalorder %s21, 1
      %p65 = por %p63, %p64
      %p67 = scmp.ne.s32.totalorder %s52, %s66
      %p68 = scmp.eq.s32.totalorder %s21, 0
      %p69 = por %p67, %p68
      %s71 = sadd.s32 %s70, 1
      %p74 = scmp.eq.s32.totalorder %s15, 1
      %p75 = scmp.ne.s32.totalorder %s70, %s72
      %p76 = scmp.eq.s32.totalorder %s15, 0
      %p77 = por %p75, %p76
      %p78 = scmp.ne.s32.totalorder %s70, %s72
      %p79 = scmp.eq.s32.totalorder %s20, 1
      %p80 = por %p78, %p79
      %p81 = scmp.ne.s32.totalorder %s72, %s73
      %p82 = scmp.eq.s32.totalorder %s20, 0
      %p83 = por %p81, %p82
      %p84 = scmp.ne.s32.totalorder %s72, %s73
      %p85 = scmp.eq.s32.totalorder %s21, 1
      %p86 = por %p84, %p85
      %p88 = scmp.ne.s32.totalorder %s73, %s87
      %p89 = scmp.eq.s32.totalorder %s21, 0
      %p90 = por %p88, %p89
      %s91 = ssub.s32 %s15, %s22
      %p92 = scmp.eq.s32.totalorder %s91, 0
      %s94 = sadd.s32 %s93, 1
      %s95 = scalar_select %p92, %s93, %s94
      %p98 = pneg %p92
      %p99 = scmp.eq.s32.totalorder %s15, 1
      %p100 = por %p98, %p99
      %p101 = scmp.ne.s32.totalorder %s93, %s96
      %p102 = scmp.eq.s32.totalorder %s15, 0
      %p103 = por %p101, %p102
      %p104 = scmp.ne.s32.totalorder %s93, %s96
      %p105 = scmp.eq.s32.totalorder %s20, 1
      %p106 = por %p104, %p105
      %p107 = scmp.ne.s32.totalorder %s96, %s97
      %p108 = scmp.eq.s32.totalorder %s20, 0
      %p109 = por %p107, %p108
      %p110 = scmp.ne.s32.totalorder %s96, %s97
      %p111 = scmp.eq.s32.totalorder %s21, 1
      %p112 = por %p110, %p111
      %p114 = scmp.ne.s32.totalorder %s97, %s113
      %p115 = scmp.eq.s32.totalorder %s21, 0
      %p116 = por %p114, %p115
      %p117 = scmp.le.s32.totalorder 1, %s15
      %p118 = scmp.lt.s32.totalorder %s15, 3
      %p119 = pnand %p117, %p118
      %p120 = pneg %p119
      // Predicated region
      $region9: #{tpu_custom_call.1} parent=5 // pred_check
        _
      $region10: #{tpu_custom_call.1} parent=5 // pred_check_branch
        %122 = sbr.rel (%p119) target = $region12
      $region11: #{tpu_custom_call.1} parent=5 // pred_region
        %s123 = ssub.s32 %s15, 1
        // Predicated region
        $region13: #{tpu_custom_call.1} parent=11 // pred_check
          %p124 = pneg %p62
        $region14: #{tpu_custom_call.1} parent=11 // pred_check_branch
          %126 = sbr.rel (%p124) target = $region16
        $region15: #{tpu_custom_call.1} parent=11 // pred_region
          _
        $region16: #{tpu_custom_call.1} parent=11 // pred_fallthru
          _
        // Predicated region
        $region17: #{tpu_custom_call.1} parent=11 // pred_check
          %p127 = pneg %p83
        $region18: #{tpu_custom_call.1} parent=11 // pred_check_branch
          %129 = sbr.rel (%p127) target = $region20
        $region19: #{tpu_custom_call.1} parent=11 // pred_region
          _
        $region20: #{tpu_custom_call.1} parent=11 // pred_fallthru
          _
      $region12: #{tpu_custom_call.1} parent=5 // pred_fallthru
        _
      %p130 = scmp.lt.s32.totalorder %s15, 2
      // Predicated region
      $region21: #{tpu_custom_call.1} parent=5 // pred_check
        %p131 = pneg %p130
      $region22: #{tpu_custom_call.1} parent=5 // pred_check_branch
        %133 = sbr.rel (%p131) target = $region24
      $region23: #{tpu_custom_call.1} parent=5 // pred_region
        // Predicated region
        $region25: #{tpu_custom_call.1} parent=23 // pred_check
          %p134 = pneg %p35
        $region26: #{tpu_custom_call.1} parent=23 // pred_check_branch
          %136 = sbr.rel (%p134) target = $region28
        $region27: #{tpu_custom_call.1} parent=23 // pred_region
          %s137 = sand.u32 %s25, 1
          %s138 = scalar_lea.sflag [#allocation4], %s137
          %s139 = sand.u32 %s25, 1
          %s140 = smul.addr %s139, 8
          %s141 = scalar_lea.vmem [#allocation3], %s140
          %s143 = ssub.s32 128, 128
          %144 = vsyncadd %s138, %s143
          %s145 = smul.addr %s15, 2
          %s146 = smul.addr %s145, 64
          %s147 = scalar_lea.hbm %s0, %s146
          %s149 = sshll.u32 %s141, 4
          %s150 = int_to_ptr.vmem [resolvable:$true] %s149
          %152 = dma.hbm_to_vmem [thread:$0]  %s147, 128, %s150, %s138
        $region28: #{tpu_custom_call.1} parent=23 // pred_fallthru
          _
      $region24: #{tpu_custom_call.1} parent=5 // pred_fallthru
        _
      %p153 = scmp.le.s32.totalorder 1, %s15
      %p154 = scmp.lt.s32.totalorder %s15, 3
      %p155 = pnand %p153, %p154
      %p156 = pneg %p155
      // Predicated region
      $region29: #{tpu_custom_call.1} parent=5 // pred_check
        _
      $region30: #{tpu_custom_call.1} parent=5 // pred_check_branch
        %158 = sbr.rel (%p155) target = $region32
      $region31: #{tpu_custom_call.1} parent=5 // pred_region
        %s159 = ssub.s32 %s15, 1
        %s160 = sand.u32 %s28, 1
        %s161 = scalar_lea.sflag [#allocation4], %s160
        %s162 = sand.u32 %s28, 1
        %s163 = smul.addr %s162, 8
        %s164 = scalar_lea.vmem [#allocation3], %s163
        // Predicated region
        $region33: #{tpu_custom_call.1} parent=31 // pred_check
          %p165 = pneg %p41
        $region34: #{tpu_custom_call.1} parent=31 // pred_check_branch
          %167 = sbr.rel (%p165) target = $region36
        $region35: #{tpu_custom_call.1} parent=31 // pred_region
          %168 = dma.done %s161, 128
        $region36: #{tpu_custom_call.1} parent=31 // pred_fallthru
          _
        %s169 = sand.u32 %s28, 1
        %s170 = scalar_lea.sflag [#allocation4], %s169
        %s171 = sand.u32 %s28, 1
        %s172 = smul.addr %s171, 8
        %s173 = scalar_lea.vmem [#allocation3], %s172
        %p174 = pneg %p41
        %p175 = pneg %p38
        %p176 = pneg %p62
        %p177 = pneg %p59
        %p178 = pneg %p83
        %p179 = pneg %p80
        %p180 = pneg %p109
        %p181 = pneg %p106
        %s182 = sand.u32 %s96, 1
        %s183 = scalar_lea.sflag [#allocation5], %s182
        %s184 = sand.u32 %s96, 1
        %s185 = smul.addr %s184, 64
        %s186 = scalar_lea.vmem [#allocation6], %s185
        %v187 = vld [vmem:[%s164] sm:$0xff]
        %v189 = vcombine.high %v187, %v187
        %191 = vst [vmem:[#allocation2] sm:$0xf] %v187
        %vm192 = vcmask 125952
        %193 = vst.msk [vmem:[#allocation2 + $0x8] sm:$0xf] %vm192, %v189
        %v194 = vcombine.low %v187, %v187
        %195 = vrot.lane.b32.xlu0 %v194, 127
        %v196 = vpop.permute.xlu0 %195
        %197 = vrot.lane.b32.xlu0 %v187, 127
        %v198 = vpop.permute.xlu0 %197
        %vm199 = vcmask 1039360
        %v200 = vsel %vm199, %v196, %v198
        %203 = vst [vmem:[#allocation2] sm:$0xf0] %v200
        %vm204 = vcmask 130052
        %205 = vst.msk [vmem:[#allocation2 + $0x8] sm:$0xf0] %vm204, %v198
        %206 = vrot.lane.b32.xlu0 %v187, 126
        %v207 = vpop.permute.xlu0 %206
        %208 = vrot.lane.b32.xlu0 %v189, 126
        %v209 = vpop.permute.xlu0 %208
        %vm210 = vcmask 1031168
        %v211 = vsel %vm210, %v207, %v209
        %214 = vst [vmem:[#allocation2 + $0x10] sm:$0xf] %v211
        %215 = vst.msk [vmem:[#allocation2 + $0x18] sm:$0xf] %vm192, %v209
        %216 = vrot.lane.b32.xlu0 %v194, 122
        %v217 = vpop.permute.xlu0 %216
        %218 = vrot.lane.b32.xlu0 %v187, 122
        %v219 = vpop.permute.xlu0 %218
        %vm220 = vcmask 998400
        %v221 = vsel %vm220, %v217, %v219
        %224 = vst [vmem:[#allocation2 + $0x10] sm:$0xf0] %v221
        %225 = vst.msk [vmem:[#allocation2 + $0x18] sm:$0xf0] %vm204, %v219
        %226 = vrot.lane.b32.xlu0 %v187, 121
        %v227 = vpop.permute.xlu0 %226
        %228 = vrot.lane.b32.xlu0 %v189, 121
        %v229 = vpop.permute.xlu0 %228
        %vm230 = vcmask 990208
        %v231 = vsel %vm230, %v227, %v229
        %234 = vst [vmem:[#allocation2 + $0x20] sm:$0xf] %v231
        %235 = vst.msk [vmem:[#allocation2 + $0x28] sm:$0xf] %vm192, %v229
        %236 = vrot.lane.b32.xlu0 %v194, 120
        %v237 = vpop.permute.xlu0 %236
        %238 = vrot.lane.b32.xlu0 %v187, 120
        %v239 = vpop.permute.xlu0 %238
        %vm240 = vcmask 982016
        %v241 = vsel %vm240, %v237, %v239
        %244 = vst [vmem:[#allocation2 + $0x20] sm:$0xf0] %v241
        %245 = vst.msk [vmem:[#allocation2 + $0x28] sm:$0xf0] %vm204, %v239
        %246 = vrot.lane.b32.xlu0 %v187, 116
        %v247 = vpop.permute.xlu0 %246
        %248 = vrot.lane.b32.xlu0 %v189, 116
        %v249 = vpop.permute.xlu0 %248
        %vm250 = vcmask 949248
        %v251 = vsel %vm250, %v247, %v249
        %254 = vst [vmem:[#allocation2 + $0x30] sm:$0xf] %v251
        %255 = vst.msk [vmem:[#allocation2 + $0x38] sm:$0xf] %vm192, %v249
        %256 = vrot.lane.b32.xlu0 %v194, 115
        %v257 = vpop.permute.xlu0 %256
        %258 = vrot.lane.b32.xlu0 %v187, 115
        %v259 = vpop.permute.xlu0 %258
        %vm260 = vcmask 941056
        %v261 = vsel %vm260, %v257, %v259
        %264 = vst [vmem:[#allocation2 + $0x30] sm:$0xf0] %v261
        %265 = vst.msk [vmem:[#allocation2 + $0x38] sm:$0xf0] %vm204, %v259
        %266 = vrot.lane.b32.xlu0 %v187, 114
        %v267 = vpop.permute.xlu0 %266
        %268 = vrot.lane.b32.xlu0 %v189, 114
        %v269 = vpop.permute.xlu0 %268
        %vm270 = vcmask 932864
        %v271 = vsel %vm270, %v267, %v269
        %274 = vst [vmem:[#allocation2 + $0x40] sm:$0xf] %v271
        %275 = vst.msk [vmem:[#allocation2 + $0x48] sm:$0xf] %vm192, %v269
        %276 = vrot.lane.b32.xlu0 %v194, 92
        %v277 = vpop.permute.xlu0 %276
        %278 = vrot.lane.b32.xlu0 %v187, 92
        %v279 = vpop.permute.xlu0 %278
        %vm280 = vcmask 752640
        %v281 = vsel %vm280, %v277, %v279
        %284 = vst [vmem:[#allocation2 + $0x40] sm:$0xf0] %v281
        %285 = vst.msk [vmem:[#allocation2 + $0x48] sm:$0xf0] %vm204, %v279
        %286 = vrot.lane.b32.xlu0 %v187, 91
        %v287 = vpop.permute.xlu0 %286
        %288 = vrot.lane.b32.xlu0 %v189, 91
        %v289 = vpop.permute.xlu0 %288
        %vm290 = vcmask 744448
        %v291 = vsel %vm290, %v287, %v289
        %294 = vst [vmem:[#allocation2 + $0x50] sm:$0xf] %v291
        %295 = vst.msk [vmem:[#allocation2 + $0x58] sm:$0xf] %vm192, %v289
        %296 = vrot.lane.b32.xlu0 %v194, 90
        %v297 = vpop.permute.xlu0 %296
        %298 = vrot.lane.b32.xlu0 %v187, 90
        %v299 = vpop.permute.xlu0 %298
        %vm300 = vcmask 736256
        %v301 = vsel %vm300, %v297, %v299
        %304 = vst [vmem:[#allocation2 + $0x50] sm:$0xf0] %v301
        %305 = vst.msk [vmem:[#allocation2 + $0x58] sm:$0xf0] %vm204, %v299
        %306 = vrot.lane.b32.xlu0 %v187, 86
        %v307 = vpop.permute.xlu0 %306
        %308 = vrot.lane.b32.xlu0 %v189, 86
        %v309 = vpop.permute.xlu0 %308
        %vm310 = vcmask 703488
        %v311 = vsel %vm310, %v307, %v309
        %314 = vst [vmem:[#allocation2 + $0x60] sm:$0xf] %v311
        %315 = vst.msk [vmem:[#allocation2 + $0x68] sm:$0xf] %vm192, %v309
        %316 = vrot.lane.b32.xlu0 %v194, 85
        %v317 = vpop.permute.xlu0 %316
        %318 = vrot.lane.b32.xlu0 %v187, 85
        %v319 = vpop.permute.xlu0 %318
        %vm320 = vcmask 695296
        %v321 = vsel %vm320, %v317, %v319
        %324 = vst [vmem:[#allocation2 + $0x60] sm:$0xf0] %v321
        %325 = vst.msk [vmem:[#allocation2 + $0x68] sm:$0xf0] %vm204, %v319
        %326 = vrot.lane.b32.xlu0 %v187, 84
        %v327 = vpop.permute.xlu0 %326
        %328 = vrot.lane.b32.xlu0 %v189, 84
        %v329 = vpop.permute.xlu0 %328
        %vm330 = vcmask 687104
        %v331 = vsel %vm330, %v327, %v329
        %334 = vst [vmem:[#allocation2 + $0x70] sm:$0xf] %v331
        %335 = vst.msk [vmem:[#allocation2 + $0x78] sm:$0xf] %vm192, %v329
        %336 = vrot.lane.b32.xlu0 %v194, 80
        %v337 = vpop.permute.xlu0 %336
        %338 = vrot.lane.b32.xlu0 %v187, 80
        %v339 = vpop.permute.xlu0 %338
        %vm340 = vcmask 654336
        %v341 = vsel %vm340, %v337, %v339
        %344 = vst [vmem:[#allocation2 + $0x70] sm:$0xf0] %v341
        %345 = vst.msk [vmem:[#allocation2 + $0x78] sm:$0xf0] %vm204, %v339
        %346 = vrot.lane.b32.xlu0 %v187, 79
        %v347 = vpop.permute.xlu0 %346
        %348 = vrot.lane.b32.xlu0 %v189, 79
        %v349 = vpop.permute.xlu0 %348
        %vm350 = vcmask 646144
        %v351 = vsel %vm350, %v347, %v349
        %354 = vst [vmem:[#allocation2 + $0x80] sm:$0xf] %v351
        %355 = vst.msk [vmem:[#allocation2 + $0x88] sm:$0xf] %vm192, %v349
        %356 = vrot.lane.b32.xlu0 %v194, 78
        %v357 = vpop.permute.xlu0 %356
        %358 = vrot.lane.b32.xlu0 %v187, 78
        %v359 = vpop.permute.xlu0 %358
        %vm360 = vcmask 637952
        %v361 = vsel %vm360, %v357, %v359
        %364 = vst [vmem:[#allocation2 + $0x80] sm:$0xf0] %v361
        %365 = vst.msk [vmem:[#allocation2 + $0x88] sm:$0xf0] %vm204, %v359
        %366 = vrot.lane.b32.xlu0 %v187, 56
        %v367 = vpop.permute.xlu0 %366
        %368 = vrot.lane.b32.xlu0 %v189, 56
        %v369 = vpop.permute.xlu0 %368
        %vm370 = vcmask 457728
        %v371 = vsel %vm370, %v367, %v369
        %374 = vst [vmem:[#allocation2 + $0x90] sm:$0xf] %v371
        %375 = vst.msk [vmem:[#allocation2 + $0x98] sm:$0xf] %vm192, %v369
        %376 = vrot.lane.b32.xlu0 %v194, 55
        %v377 = vpop.permute.xlu0 %376
        %378 = vrot.lane.b32.xlu0 %v187, 55
        %v379 = vpop.permute.xlu0 %378
        %vm380 = vcmask 449536
        %v381 = vsel %vm380, %v377, %v379
        %384 = vst [vmem:[#allocation2 + $0x90] sm:$0xf0] %v381
        %385 = vst.msk [vmem:[#allocation2 + $0x98] sm:$0xf0] %vm204, %v379
        %386 = vrot.lane.b32.xlu0 %v187, 54
        %v387 = vpop.permute.xlu0 %386
        %388 = vrot.lane.b32.xlu0 %v189, 54
        %v389 = vpop.permute.xlu0 %388
        %vm390 = vcmask 441344
        %v391 = vsel %vm390, %v387, %v389
        %394 = vst [vmem:[#allocation2 + $0xa0] sm:$0xf] %v391
        %395 = vst.msk [vmem:[#allocation2 + $0xa8] sm:$0xf] %vm192, %v389
        %396 = vrot.lane.b32.xlu0 %v194, 50
        %v397 = vpop.permute.xlu0 %396
        %398 = vrot.lane.b32.xlu0 %v187, 50
        %v399 = vpop.permute.xlu0 %398
        %vm400 = vcmask 408576
        %v401 = vsel %vm400, %v397, %v399
        %404 = vst [vmem:[#allocation2 + $0xa0] sm:$0xf0] %v401
        %405 = vst.msk [vmem:[#allocation2 + $0xa8] sm:$0xf0] %vm204, %v399
        %406 = vrot.lane.b32.xlu0 %v187, 49
        %v407 = vpop.permute.xlu0 %406
        %408 = vrot.lane.b32.xlu0 %v189, 49
        %v409 = vpop.permute.xlu0 %408
        %vm410 = vcmask 400384
        %v411 = vsel %vm410, %v407, %v409
        %414 = vst [vmem:[#allocation2 + $0xb0] sm:$0xf] %v411
        %415 = vst.msk [vmem:[#allocation2 + $0xb8] sm:$0xf] %vm192, %v409
        %416 = vrot.lane.b32.xlu0 %v194, 48
        %v417 = vpop.permute.xlu0 %416
        %418 = vrot.lane.b32.xlu0 %v187, 48
        %v419 = vpop.permute.xlu0 %418
        %vm420 = vcmask 392192
        %v421 = vsel %vm420, %v417, %v419
        %424 = vst [vmem:[#allocation2 + $0xb0] sm:$0xf0] %v421
        %425 = vst.msk [vmem:[#allocation2 + $0xb8] sm:$0xf0] %vm204, %v419
        %426 = vrot.lane.b32.xlu0 %v187, 44
        %v427 = vpop.permute.xlu0 %426
        %428 = vrot.lane.b32.xlu0 %v189, 44
        %v429 = vpop.permute.xlu0 %428
        %vm430 = vcmask 359424
        %v431 = vsel %vm430, %v427, %v429
        %434 = vst [vmem:[#allocation2 + $0xc0] sm:$0xf] %v431
        %435 = vst.msk [vmem:[#allocation2 + $0xc8] sm:$0xf] %vm192, %v429
        %436 = vrot.lane.b32.xlu0 %v194, 43
        %v437 = vpop.permute.xlu0 %436
        %438 = vrot.lane.b32.xlu0 %v187, 43
        %v439 = vpop.permute.xlu0 %438
        %vm440 = vcmask 351232
        %v441 = vsel %vm440, %v437, %v439
        %444 = vst [vmem:[#allocation2 + $0xc0] sm:$0xf0] %v441
        %445 = vst.msk [vmem:[#allocation2 + $0xc8] sm:$0xf0] %vm204, %v439
        %446 = vrot.lane.b32.xlu0 %v187, 42
        %v447 = vpop.permute.xlu0 %446
        %448 = vrot.lane.b32.xlu0 %v189, 42
        %v449 = vpop.permute.xlu0 %448
        %vm450 = vcmask 343040
        %v451 = vsel %vm450, %v447, %v449
        %454 = vst [vmem:[#allocation2 + $0xd0] sm:$0xf] %v451
        %455 = vst.msk [vmem:[#allocation2 + $0xd8] sm:$0xf] %vm192, %v449
        %v456 = vld [vmem:[%s1] sm:$0xff]
        %v457 = vld [vmem:[%s1 + $0x8] sm:$0xff]
        %v458 = vld [vmem:[%s1 + $0x10] sm:$0xff]
        %v459 = vld [vmem:[%s1 + $0x18] sm:$0xff]
        %v460 = vld [vmem:[#allocation2] sm:$0xff]
        %v461 = vld [vmem:[#allocation2 + $0x8] sm:$0xff]
        %v462 = vld [vmem:[#allocation2 + $0x10] sm:$0xff]
        %v463 = vld [vmem:[#allocation2 + $0x18] sm:$0xff]
        %v464 = vld [vmem:[#allocation2 + $0x20] sm:$0xff]
        %v465 = vld [vmem:[#allocation2 + $0x28] sm:$0xff]
        %v466 = vld [vmem:[#allocation2 + $0x30] sm:$0xff]
        %v467 = vld [vmem:[#allocation2 + $0x38] sm:$0xff]
        %v468 = vld [vmem:[#allocation2 + $0x40] sm:$0xff]
        %v469 = vld [vmem:[#allocation2 + $0x48] sm:$0xff]
        %v470 = vld [vmem:[#allocation2 + $0x50] sm:$0xff]
        %v471 = vld [vmem:[#allocation2 + $0x58] sm:$0xff]
        %v472 = vld [vmem:[#allocation2 + $0x60] sm:$0xff]
        %v473 = vld [vmem:[#allocation2 + $0x68] sm:$0xff]
        %v474 = vld [vmem:[#allocation2 + $0x70] sm:$0xff]
        %v475 = vld [vmem:[#allocation2 + $0x78] sm:$0xff]
        %v476 = vld [vmem:[#allocation2 + $0x80] sm:$0xff]
        %v477 = vld [vmem:[#allocation2 + $0x88] sm:$0xff]
        %v478 = vld [vmem:[#allocation2 + $0x90] sm:$0xff]
        %v479 = vld [vmem:[#allocation2 + $0x98] sm:$0xff]
        %v480 = vld [vmem:[#allocation2 + $0xa0] sm:$0xff]
        %v481 = vld [vmem:[#allocation2 + $0xa8] sm:$0xff]
        %v482 = vld [vmem:[#allocation2 + $0xb0] sm:$0xff]
        %v483 = vld [vmem:[#allocation2 + $0xb8] sm:$0xff]
        %v484 = vld [vmem:[#allocation2 + $0xc0] sm:$0xff]
        %v485 = vld [vmem:[#allocation2 + $0xc8] sm:$0xff]
        %v486 = vld [vmem:[#allocation2 + $0xd0] sm:$0xf]
        %v487 = vld [vmem:[#allocation2 + $0xd8] sm:$0xf]
        %v488 = vld [vmem:[%s2] sm:$0xff]
        %v489 = vld [vmem:[%s2 + $0x8] sm:$0xff]
        %v490 = vld [vmem:[%s2 + $0x10] sm:$0xff]
        %v491 = vld [vmem:[%s2 + $0x18] sm:$0xff]
        %493 = vset.pattern.permute.xlu0 0
        %494 = vperm.xlu0 %493, %v488
        %v495 = vpop.permute.xlu0 %494
        %498 = vset.pattern.permute.xlu0 0
        %499 = vperm.xlu0 %498, %v489
        %v500 = vpop.permute.xlu0 %499
        %503 = vset.pattern.permute.xlu0 0
        %504 = vperm.xlu0 %503, %v490
        %v505 = vpop.permute.xlu0 %504
        %508 = vset.pattern.permute.xlu0 0
        %509 = vperm.xlu0 %508, %v491
        %v510 = vpop.permute.xlu0 %509
        %vm512 = vcmask 883712
        %v514 = vsel %vm512, %v456, 0
        %v517 = vsel %vm512, %v457, 0
        %v520 = vsel %vm512, %v458, 0
        %v523 = vsel %vm512, %v459, 0
        %vm525 = vcmask 1043456
        %v527 = vsel %vm525, %v486, 0
        %v530 = vsel %vm525, %v487, 0
        %532 = vmatprep.subr.mxu0 %v461
        %533 = vmatpush1.msra.mxu0 %v460
        %534 = vmatprep.subr.mxu0 %v463
        %535 = vmatpush1.msra.mxu0 %v462
        %536 = vmatprep.subr.mxu0 %v465
        %537 = vmatpush1.msra.mxu0 %v464
        %538 = vmatprep.subr.mxu0 %v467
        %539 = vmatpush1.msra.mxu0 %v466
        %540 = vmatprep.subr.mxu0 %v469
        %541 = vmatpush1.msra.mxu0 %v468
        %542 = vmatprep.subr.mxu0 %v471
        %543 = vmatpush1.msra.mxu0 %v470
        %544 = vmatprep.subr.mxu0 %v473
        %545 = vmatpush1.msra.mxu0 %v472
        %546 = vmatprep.subr.mxu0 %v475
        %547 = vmatpush1.msra.mxu0 %v474
        %548 = vmatprep.subr.mxu0 %v477
        %549 = vmatpush1.msra.mxu0 %v476
        %550 = vmatprep.subr.mxu0 %v479
        %551 = vmatpush1.msra.mxu0 %v478
        %552 = vmatprep.subr.mxu0 %v481
        %553 = vmatpush1.msra.mxu0 %v480
        %554 = vmatprep.subr.mxu0 %v483
        %555 = vmatpush1.msra.mxu0 %v482
        %556 = vmatprep.subr.mxu0 %v485
        %557 = vmatpush1.msra.mxu0 %v484
        %558 = vmatprep.subr.mxu0 %v530
        %559 = vmatpush1.msra.mxu0 %v527
        %560 = vmatprep.subr.mxu0 0.0
        %561 = vmatpush1.msra.mxu0 0.0
        %562 = vmatprep.subr.mxu0 0.0
        %563 = vmatpush1.msra.mxu0 0.0
        %564 = vmatprep.subr.mxu0 0.0
        %565 = vmatpush1.msra.mxu0 0.0
        %566 = vmatprep.subr.mxu0 0.0
        %567 = vmatpush1.msra.mxu0 0.0
        %568 = vmatprep.subr.mxu0 0.0
        %569 = vmatpush1.msra.mxu0 0.0
        %570 = vmatprep.subr.mxu0 0.0
        %571 = vmatpush1.msra.mxu0 0.0
        %572 = vmatprep.subr.mxu0 0.0
        %573 = vmatpush1.msra.mxu0 0.0
        %574 = vmatprep.subr.mxu0 0.0
        %575 = vmatpush1.msra.mxu0 0.0
        %576 = vmatprep.subr.mxu0 0.0
        %577 = vmatpush1.msra.mxu0 0.0
        %578 = vmatprep.subr.mxu0 0.0
        %579 = vmatpush1.msra.mxu0 0.0
        %580 = vmatprep.subr.mxu0 0.0
        %581 = vmatpush1.msra.mxu0 0.0
        %582 = vmatprep.subr.mxu0 0.0
        %583 = vmatpush1.msra.mxu0 0.0
        %584 = vmatprep.subr.mxu0 0.0
        %585 = vmatpush1.msra.mxu0 0.0
        %586 = vmatprep.subr.mxu0 0.0
        %587 = vmatpush1.msra.mxu0 0.0
        %588 = vmatprep.subr.mxu0 0.0
        %589 = vmatpush1.msra.mxu0 0.0
        %590 = vmatprep.subr.mxu0 0.0
        %591 = vmatpush1.msra.mxu0 0.0
        %592 = vmatprep.subr.mxu0 0.0
        %593 = vmatpush1.msra.mxu0 0.0
        %594 = vmatprep.subr.mxu0 0.0
        %595 = vmatpush1.msra.mxu0 0.0
        %596 = vmatprep.mubr.f32.mxu0 0.0
        %597 = vmatmul.mubr.f32.gmra.mrb[0].mxu0 %v514
        %v598 = vpop.f32.mrb[0].mxu0
        %v599 = vadd.f32 %v495, %v598
        %v600 = vpop.f32.mrb[0].mxu0
        %v601 = vadd.f32 %v495, %v600
        %602 = vmatprep.mubr.f32.mxu0 0.0
        %603 = vmatmul.mubr.f32.gmra.mrb[0].mxu0 %v517
        %v604 = vpop.f32.mrb[0].mxu0
        %v605 = vadd.f32 %v500, %v604
        %v606 = vpop.f32.mrb[0].mxu0
        %v607 = vadd.f32 %v500, %v606
        %608 = vmatprep.mubr.f32.mxu0 0.0
        %609 = vmatmul.mubr.f32.gmra.mrb[0].mxu0 %v520
        %v610 = vpop.f32.mrb[0].mxu0
        %v611 = vadd.f32 %v505, %v610
        %v612 = vpop.f32.mrb[0].mxu0
        %v613 = vadd.f32 %v505, %v612
        %614 = vmatprep.mubr.f32.mxu0 0.0
        %615 = vmatmul.mubr.f32.gmra.mrb[0].mxu0 %v523
        %v616 = vpop.f32.mrb[0].mxu0
        %v617 = vadd.f32 %v510, %v616
        %v618 = vpop.f32.mrb[0].mxu0
        %v619 = vadd.f32 %v510, %v618
        %620 = vdwg.mxu0
        %621 = vst [vmem:[%s186] sm:$0xff] %v599
        %vm622 = vcmask 130048
        %623 = vst.msk [vmem:[%s186 + $0x8] sm:$0xff] %vm622, %v601
        %624 = vst [vmem:[%s186 + $0x10] sm:$0xff] %v605
        %625 = vst.msk [vmem:[%s186 + $0x18] sm:$0xff] %vm622, %v607
        %626 = vst [vmem:[%s186 + $0x20] sm:$0xff] %v611
        %627 = vst.msk [vmem:[%s186 + $0x28] sm:$0xff] %vm622, %v613
        %628 = vst [vmem:[%s186 + $0x30] sm:$0xff] %v617
        %629 = vst.msk [vmem:[%s186 + $0x38] sm:$0xff] %vm622, %v619
        %s630 = sand.u32 %s96, 1
        %s631 = scalar_lea.sflag [#allocation5], %s630
        %s632 = sand.u32 %s96, 1
        %s633 = smul.addr %s632, 64
        %s634 = scalar_lea.vmem [#allocation6], %s633
        // Predicated region
        $region37: #{tpu_custom_call.1} parent=31 // pred_check
          %p635 = pneg %p106
        $region38: #{tpu_custom_call.1} parent=31 // pred_check_branch
          %637 = sbr.rel (%p635) target = $region40
        $region39: #{tpu_custom_call.1} parent=31 // pred_region
          %s639 = ssub.s32 1024, 1024
          %640 = vsyncadd %s631, %s639
          %s641 = smul.addr %s20, 8
          %s642 = smul.addr %s641, 128
          %s643 = scalar_lea.hbm %s3, %s642
          %s644 = sshll.u32 %s634, 4
          %s645 = int_to_ptr.vmem [resolvable:$true] %s644
          %650 = dma.vmem_to_hbm [thread:$0]  %s645, 1024, %s643, %s631, 256, 256, 16
        $region40: #{tpu_custom_call.1} parent=31 // pred_fallthru
          _
      $region32: #{tpu_custom_call.1} parent=5 // pred_fallthru
        _
      %p651 = scmp.le.s32.totalorder 2, %s15
      // Predicated region
      $region41: #{tpu_custom_call.1} parent=5 // pred_check
        %p652 = pneg %p651
      $region42: #{tpu_custom_call.1} parent=5 // pred_check_branch
        %654 = sbr.rel (%p652) target = $region44
      $region43: #{tpu_custom_call.1} parent=5 // pred_region
        %s655 = ssub.s32 %s15, 2
        // Predicated region
        $region45: #{tpu_custom_call.1} parent=43 // pred_check
          %p656 = pneg %p112
        $region46: #{tpu_custom_call.1} parent=43 // pred_check_branch
          %658 = sbr.rel (%p656) target = $region48
        $region47: #{tpu_custom_call.1} parent=43 // pred_region
          %s659 = sand.u32 %s97, 1
          %s660 = scalar_lea.sflag [#allocation5], %s659
          %s661 = sand.u32 %s97, 1
          %s662 = smul.addr %s661, 64
          %s663 = scalar_lea.vmem [#allocation6], %s662
          %664 = dma.done %s660, 1024
        $region48: #{tpu_custom_call.1} parent=43 // pred_fallthru
          _
      $region44: #{tpu_custom_call.1} parent=5 // pred_fallthru
        _
    $region6: #{tpu_custom_call.1} parent=1 // loop_footer
      %s19 = sadd.s32 1, %s15
    $region7: #{tpu_custom_call.1} parent=1 // loop_footer_branch
      %14 = sbr.rel target = $region3
    $region8: #{tpu_custom_call.1} parent=1 // loop_exit
      _
    %665 = vsyncpa [#allocation4], 1
    %s666 = scalar_lea.sflag [#allocation4], 1
    %667 = vsyncpa %s666, 1
    %668 = vsyncpa [#allocation5], 1
    %s669 = scalar_lea.sflag [#allocation5], 1
    %670 = vsyncpa %s669, 1

</llo_original>
